<compile_context>
chip_gen: v7x
topology: tpu7x:2x2x1
jax: 0.10.0
libtpu: 0.0.40
codegen_flags: <defaults>
</compile_context>

<pallas_src>
import functools

import numpy as np
import jax
import jax.numpy as jnp
from jax.experimental import pallas as pl
from jax.experimental.pallas import tpu as pltpu


def _round_up(x, m):
    return ((x + m - 1) // m) * m


def _gated_cnn_kernel(x_ref, xl_ref, xr_ref, w_ref, o_ref, buf_ref, *,
                      kernel_size, pad, tile_s, halo, seq_len):
    # x_ref  : (1, Ts, H) f32  main sequence tile (rows [t*Ts, (t+1)*Ts) of x)
    # xl_ref : (1, Th, H) f32  block ending exactly at row t*Ts (left halo source)
    # xr_ref : (1, Th, H) f32  block starting at row (t+1)*Ts (right halo source)
    # w_ref  : (K, H, 2H) bf16 fused weights, columns = [conv | gate]
    # o_ref  : (1, Ts, H)      output tile, a * sigmoid(g)
    # buf_ref: (Ts + 2*pad, H) bf16 scratch: [left pad | main | right pad]
    K, Ts, Th, S = kernel_size, tile_s, halo, seq_len
    H = o_ref.shape[-1]
    t = pl.program_id(1)

    # ---- stage the bf16 cast of the tile (plus boundary zeros) into the scratch ----
    if S % Ts != 0:  # last tile is ragged: zero the rows past the real sequence end
        row = t * Ts + jax.lax.broadcasted_iota(jnp.int32, (Ts, 1), 0)
        xm = jnp.where(row < S, x_ref[0], 0.0).astype(jnp.bfloat16)
    else:
        xm = x_ref[0].astype(jnp.bfloat16)
    buf_ref[pad:pad + Ts, :] = xm

    if pad > 0:
        # left halo: last `pad` rows of the previous Th-block; zeros for the first tile
        left = jnp.where(t > 0, xl_ref[0, Th - pad:, :], 0.0).astype(jnp.bfloat16)
        buf_ref[0:pad, :] = left
        # right halo: first `pad` rows after the tile; zeros past the sequence end
        rrow = (t + 1) * Ts + jax.lax.broadcasted_iota(jnp.int32, (pad, 1), 0)
        right = jnp.where(rrow < S, xr_ref[0, :pad, :], 0.0).astype(jnp.bfloat16)
        buf_ref[pad + Ts:pad + Ts + pad, :] = right

    # ---- K per-tap MXU matmuls, [conv | gate] fused along the lane dim, f32 acc ----
    acc = jnp.zeros((Ts, 2 * H), jnp.float32)
    for k in range(K):
        acc = acc + jnp.dot(buf_ref[k:k + Ts, :], w_ref[k],
                            preferred_element_type=jnp.float32)

    a = acc[:, :H]
    g = acc[:, H:]
    o_ref[0, :, :] = (a * jax.nn.sigmoid(g)).astype(o_ref.dtype)


def gated_cnn(x, w_cnn, w_gate, *, out_dtype=jnp.bfloat16, tile_bytes=2 << 20):
    """x: (B, S, H).  w_cnn, w_gate: PyTorch Conv1d weight layout (out=H, in=H, K).
    Returns (B, S, H) == torch: cnn(x) * sigmoid(gate(x)) with 'same' padding (odd K)."""
    B, S, H = x.shape
    K = w_cnn.shape[-1]
    if K % 2 != 1:
        raise ValueError("even kernel_size unsupported: PyTorch same-padding is asymmetric")
    pad = (K - 1) // 2

    # Halo block granularity (f32 input -> 8-row native sublane tile).
    Th = max(8, _round_up(max(pad, 1), 8))
    # Sequence tile: ~tile_bytes of HBM traffic per grid step, multiple of Th.
    in_b = x.dtype.itemsize
    out_b = np.dtype(out_dtype).itemsize
    per_row = H * (in_b + out_b)
    Ts = max(Th, (tile_bytes // per_row) // Th * Th)
    Ts = min(Ts, (8192 // Th) * Th, _round_up(S, Th))
    nT = pl.cdiv(S, Ts)
    hs = Ts // Th
    n_halo_blk = pl.cdiv(S, Th)

    # Fused weights (K, H_in, 2*H_out) = [conv | gate]; element [k, i, o] = W[o, i, k].
    wa = jnp.transpose(w_cnn, (2, 1, 0))
    wg = jnp.transpose(w_gate, (2, 1, 0))
    w_cat = jnp.concatenate([wa, wg], axis=-1).astype(jnp.bfloat16)   # (K, H, 2H)

    kernel = functools.partial(_gated_cnn_kernel, kernel_size=K, pad=pad,
                               tile_s=Ts, halo=Th, seq_len=S)

    # VMEM footprint (double-buffered pipeline tiles + scratch + f32 temps) + headroom.
    vmem_bytes = (
        2 * Ts * H * in_b                      # main input tile (double-buffered)
        + 2 * 2 * Th * H * in_b                # two halo tiles (double-buffered)
        + 2 * Ts * H * out_b                   # output tile (double-buffered)
        + 2 * K * H * 2 * H * 2                # fused bf16 weights (double-buffered)
        + (Ts + 2 * pad) * H * 2               # scratch ring
        + Ts * 2 * H * 4 + Ts * H * 4)         # f32 accumulator + in-kernel temps
    vmem_limit = min(max(int(vmem_bytes * 1.5) + (2 << 20), 16 << 20), 32 << 20)

    return pl.pallas_call(
        kernel,
        out_shape=jax.ShapeDtypeStruct((B, S, H), out_dtype),
        grid_spec=pltpu.PrefetchScalarGridSpec(
            num_scalar_prefetch=0,
            grid=(B, nT),
            in_specs=[
                # main sequence tile
                pl.BlockSpec((1, Ts, H), lambda b, t: (b, t, 0)),
                # left-halo source block (clamped at the front; masked in-kernel)
                pl.BlockSpec((1, Th, H),
                             lambda b, t: (b, jnp.maximum(t * hs - 1, 0), 0)),
                # right-halo source block (clamped at the back; masked in-kernel)
                pl.BlockSpec((1, Th, H),
                             lambda b, t: (b, jnp.minimum((t + 1) * hs, n_halo_blk - 1), 0)),
                # fused weights: constant index -> resident, never re-fetched
                pl.BlockSpec((K, H, 2 * H), lambda b, t: (0, 0, 0)),
            ],
            out_specs=pl.BlockSpec((1, Ts, H), lambda b, t: (b, t, 0)),
            scratch_shapes=[pltpu.VMEM((Ts + 2 * pad, H), jnp.bfloat16)],
        ),
        compiler_params=pltpu.CompilerParams(
            dimension_semantics=("parallel", "parallel"),
            vmem_limit_bytes=vmem_limit,
        ),
    )(x, x, x, w_cat)


def gated_cnn_reference(x, w_cnn, w_gate):
    """Pure-JAX reference matching the PyTorch forward exactly (full f32 precision)."""
    K = w_cnn.shape[-1]
    pad = (K - 1) // 2
    x_ncl = jnp.transpose(x, (0, 2, 1))  # (B, H, S)

    def conv(w):
        return jax.lax.conv_general_dilated(
            x_ncl, w, window_strides=(1,), padding=((pad, pad),),
            dimension_numbers=("NCH", "OIH", "NCH"),
            precision=jax.lax.Precision.HIGHEST)

    a = jnp.transpose(conv(w_cnn), (0, 2, 1))
    b = jnp.transpose(conv(w_gate), (0, 2, 1))
    return a * jax.nn.sigmoid(b)


if __name__ == "__main__":
    # Small config consistent with the module: hidden_size=32, kernel_size=3.
    B, S, H, K = 2, 8, 32, 3

    key = jax.random.PRNGKey(0)
    kx, ka, kg = jax.random.split(key, 3)
    x = jax.random.normal(kx, (B, S, H), dtype=jnp.float32)
    # Conv1d(hidden, hidden, K, bias=False) weight shape: (out=H, in=H, K)
    w_cnn = jax.random.normal(ka, (H, H, K), dtype=jnp.float32) * 0.1
    w_gate = jax.random.normal(kg, (H, H, K), dtype=jnp.float32) * 0.1

    out = jax.block_until_ready(gated_cnn(x, w_cnn, w_gate))
    assert out.shape == (B, S, H)
    assert out.dtype == jnp.bfloat16
    out_f32 = out.astype(jnp.float32)

    # Tight check against a reference fed the same bf16-rounded inputs
    # (isolates kernel math from the intentional bf16 quantization).
    q = lambda a: a.astype(jnp.bfloat16).astype(jnp.float32)
    ref_q = gated_cnn_reference(q(x), q(w_cnn), q(w_gate))
    assert jnp.allclose(out_f32, ref_q, atol=3e-2, rtol=3e-2), "mismatch vs bf16-input reference"

    # Loose check against the full-precision f32 reference (bf16 rounding only).
    ref = gated_cnn_reference(x, w_cnn, w_gate)
    assert jnp.allclose(out_f32, ref, atol=1e-1, rtol=1e-1), "mismatch vs f32 reference"

    print("KERNEL_OK")
</pallas_src>

<mosaic_0001>
module attributes {stable_mosaic.version = 11 : i64} {
  func.func @_gated_cnn_kernel(%arg0: i32, %arg1: i32, %arg2: memref<1x8x32xf32, #tpu.memory_space<vmem>>, %arg3: memref<1x8x32xf32, #tpu.memory_space<vmem>>, %arg4: memref<1x8x32xf32, #tpu.memory_space<vmem>>, %arg5: memref<3x32x64xbf16, #tpu.memory_space<vmem>>, %arg6: memref<1x8x32xbf16, #tpu.memory_space<vmem>>, %arg7: memref<10x32xbf16, #tpu.memory_space<vmem>>) attributes {dimension_semantics = [#tpu.dimension_semantics<parallel>, #tpu.dimension_semantics<parallel>], iteration_bounds = array<i64: 2, 1>, scalar_prefetch = 0 : i64, scratch_operands = 1 : i64, tpu.core_type = #tpu.core_type<tc>, window_params = [{transform_indices = @transform_0, window_bounds = array<i64: 1, 8, 32>}, {transform_indices = @transform_1, window_bounds = array<i64: 1, 8, 32>}, {transform_indices = @transform_2, window_bounds = array<i64: 1, 8, 32>}, {pipeline_mode = #tpu.pipeline_mode<synchronous>, transform_indices = @transform_3, window_bounds = array<i64: 3, 32, 64>}, {transform_indices = @transform_4, window_bounds = array<i64: 1, 8, 32>}]} {
    %c0 = arith.constant 0 : index
    %c0_0 = arith.constant 0 : index
    %c0_1 = arith.constant 0 : index
    %0 = vector.load %arg2[%c0, %c0_0, %c0_1] : memref<1x8x32xf32, #tpu.memory_space<vmem>>, vector<1x8x32xf32>
    %1 = vector.shape_cast %0 : vector<1x8x32xf32> to vector<8x32xf32>
    %2 = arith.truncf %1 : vector<8x32xf32> to vector<8x32xbf16>
    %c1 = arith.constant 1 : index
    %c0_2 = arith.constant 0 : index
    %3 = vector.load %arg7[%c1, %c0_2] : memref<10x32xbf16, #tpu.memory_space<vmem>>, vector<8x32xbf16>
    tpu.vector_store %arg7[%c1, %c0_2], %2 {strides = array<i32>} : memref<10x32xbf16, #tpu.memory_space<vmem>>, vector<8x32xbf16>,
    %c0_i32 = arith.constant 0 : i32
    %4 = arith.cmpi sgt, %arg1, %c0_i32 : i32
    %c0_3 = arith.constant 0 : index
    %c7 = arith.constant 7 : index
    %c0_4 = arith.constant 0 : index
    %5 = vector.load %arg3[%c0_3, %c7, %c0_4] : memref<1x8x32xf32, #tpu.memory_space<vmem>>, vector<1x1x32xf32>
    %6 = vector.shape_cast %5 : vector<1x1x32xf32> to vector<1x32xf32>
    %cst = arith.constant 0.000000e+00 : f32
    %7 = vector.broadcast %cst : f32 to vector<1x32xf32>
    %8 = arith.select %4, %6, %7 : vector<1x32xf32>
    %9 = arith.truncf %8 : vector<1x32xf32> to vector<1x32xbf16>
    %c0_5 = arith.constant 0 : index
    %c0_6 = arith.constant 0 : index
    %10 = vector.load %arg7[%c0_5, %c0_6] : memref<10x32xbf16, #tpu.memory_space<vmem>>, vector<1x32xbf16>
    tpu.vector_store %arg7[%c0_5, %c0_6], %9 {strides = array<i32>} : memref<10x32xbf16, #tpu.memory_space<vmem>>, vector<1x32xbf16>,
    %c1_i32 = arith.constant 1 : i32
    %11 = arith.addi %arg1, %c1_i32 : i32
    %c8_i32 = arith.constant 8 : i32
    %12 = arith.muli %11, %c8_i32 : i32
    %13 = tpu.iota {dimensions = array<i32: 0>} : vector<1x1xi32>
    %14 = vector.broadcast %12 : i32 to vector<1x1xi32>
    %15 = arith.addi %14, %13 : vector<1x1xi32>
    %c8_i32_7 = arith.constant 8 : i32
    %16 = vector.broadcast %c8_i32_7 : i32 to vector<1x1xi32>
    %17 = arith.cmpi slt, %15, %16 : vector<1x1xi32>
    %c0_8 = arith.constant 0 : index
    %c0_9 = arith.constant 0 : index
    %c0_10 = arith.constant 0 : index
    %18 = vector.load %arg4[%c0_8, %c0_9, %c0_10] : memref<1x8x32xf32, #tpu.memory_space<vmem>>, vector<1x1x32xf32>
    %19 = vector.shape_cast %18 : vector<1x1x32xf32> to vector<1x32xf32>
    %cst_11 = arith.constant 0.000000e+00 : f32
    %20 = vector.shape_cast %17 : vector<1x1xi1> to vector<1x1xi1>
    %21 = vector.broadcast %20 : vector<1x1xi1> to vector<1x32xi1>
    %22 = vector.broadcast %cst_11 : f32 to vector<1x32xf32>
    %23 = arith.select %21, %19, %22 : vector<1x32xi1>, vector<1x32xf32>
    %24 = arith.truncf %23 : vector<1x32xf32> to vector<1x32xbf16>
    %c9 = arith.constant 9 : index
    %c0_12 = arith.constant 0 : index
    %25 = vector.load %arg7[%c9, %c0_12] : memref<10x32xbf16, #tpu.memory_space<vmem>>, vector<1x32xbf16>
    tpu.vector_store %arg7[%c9, %c0_12], %24 {strides = array<i32>} : memref<10x32xbf16, #tpu.memory_space<vmem>>, vector<1x32xbf16>,
    %cst_13 = arith.constant 0.000000e+00 : f32
    %26 = vector.broadcast %cst_13 : f32 to vector<8x64xf32>
    %c0_14 = arith.constant 0 : index
    %c0_15 = arith.constant 0 : index
    %27 = vector.load %arg7[%c0_14, %c0_15] : memref<10x32xbf16, #tpu.memory_space<vmem>>, vector<8x32xbf16>
    %c0_16 = arith.constant 0 : index
    %c0_17 = arith.constant 0 : index
    %c0_18 = arith.constant 0 : index
    %28 = vector.load %arg5[%c0_16, %c0_17, %c0_18] : memref<3x32x64xbf16, #tpu.memory_space<vmem>>, vector<1x32x64xbf16>
    %29 = vector.shape_cast %28 : vector<1x32x64xbf16> to vector<32x64xbf16>
    %cst_19 = arith.constant dense<0.000000e+00> : vector<8x64xf32>
    %30 = tpu.matmul %27, %29, %cst_19 {dimension_numbers = #tpu.dot_dimension_numbers<[1], [0], [0], [1], [0, 0, 1, 1], [], []>} : vector<8x32xbf16>, vector<32x64xbf16>, vector<8x64xf32> -> vector<8x64xf32>
    %31 = arith.addf %26, %30 : vector<8x64xf32>
    %c1_20 = arith.constant 1 : index
    %c0_21 = arith.constant 0 : index
    %32 = vector.load %arg7[%c1_20, %c0_21] : memref<10x32xbf16, #tpu.memory_space<vmem>>, vector<8x32xbf16>
    %c1_22 = arith.constant 1 : index
    %c0_23 = arith.constant 0 : index
    %c0_24 = arith.constant 0 : index
    %33 = vector.load %arg5[%c1_22, %c0_23, %c0_24] : memref<3x32x64xbf16, #tpu.memory_space<vmem>>, vector<1x32x64xbf16>
    %34 = vector.shape_cast %33 : vector<1x32x64xbf16> to vector<32x64xbf16>
    %cst_25 = arith.constant dense<0.000000e+00> : vector<8x64xf32>
    %35 = tpu.matmul %32, %34, %cst_25 {dimension_numbers = #tpu.dot_dimension_numbers<[1], [0], [0], [1], [0, 0, 1, 1], [], []>} : vector<8x32xbf16>, vector<32x64xbf16>, vector<8x64xf32> -> vector<8x64xf32>
    %36 = arith.addf %31, %35 : vector<8x64xf32>
    %c2 = arith.constant 2 : index
    %c0_26 = arith.constant 0 : index
    %37 = vector.load %arg7[%c2, %c0_26] : memref<10x32xbf16, #tpu.memory_space<vmem>>, vector<8x32xbf16>
    %c2_27 = arith.constant 2 : index
    %c0_28 = arith.constant 0 : index
    %c0_29 = arith.constant 0 : index
    %38 = vector.load %arg5[%c2_27, %c0_28, %c0_29] : memref<3x32x64xbf16, #tpu.memory_space<vmem>>, vector<1x32x64xbf16>
    %39 = vector.shape_cast %38 : vector<1x32x64xbf16> to vector<32x64xbf16>
    %cst_30 = arith.constant dense<0.000000e+00> : vector<8x64xf32>
    %40 = tpu.matmul %37, %39, %cst_30 {dimension_numbers = #tpu.dot_dimension_numbers<[1], [0], [0], [1], [0, 0, 1, 1], [], []>} : vector<8x32xbf16>, vector<32x64xbf16>, vector<8x64xf32> -> vector<8x64xf32>
    %41 = arith.addf %36, %40 : vector<8x64xf32>
    %42 = vector.extract_strided_slice %41 {offsets = [0, 0], sizes = [8, 32], strides = [1, 1]} : vector<8x64xf32> to vector<8x32xf32>
    %43 = vector.extract_strided_slice %41 {offsets = [0, 32], sizes = [8, 32], strides = [1, 1]} : vector<8x64xf32> to vector<8x32xf32>
    %44 = arith.negf %43 : vector<8x32xf32>
    %45 = math.exp %44 : vector<8x32xf32>
    %cst_31 = arith.constant 1.000000e+00 : f32
    %46 = vector.broadcast %cst_31 : f32 to vector<8x32xf32>
    %47 = arith.addf %46, %45 : vector<8x32xf32>
    %48 = arith.divf %46, %47 : vector<8x32xf32>
    %49 = arith.mulf %42, %48 : vector<8x32xf32>
    %50 = arith.truncf %49 : vector<8x32xf32> to vector<8x32xbf16>
    %c0_32 = arith.constant 0 : index
    %c0_33 = arith.constant 0 : index
    %c0_34 = arith.constant 0 : index
    %51 = vector.load %arg6[%c0_32, %c0_33, %c0_34] : memref<1x8x32xbf16, #tpu.memory_space<vmem>>, vector<1x8x32xbf16>
    %52 = vector.shape_cast %51 : vector<1x8x32xbf16> to vector<8x32xbf16>
    %53 = vector.shape_cast %50 : vector<8x32xbf16> to vector<1x8x32xbf16>
    tpu.vector_store %arg6[%c0_32, %c0_33, %c0_34], %53 {strides = array<i32>} : memref<1x8x32xbf16, #tpu.memory_space<vmem>>, vector<1x8x32xbf16>,
    return
  }
  func.func @transform_0(%arg0: i32, %arg1: i32) -> (i32, i32, i32) {
    %c0_i32 = arith.constant 0 : i32
    %c0_i32_0 = arith.constant 0 : i32
    return %arg0, %arg1, %c0_i32 : i32, i32, i32
  }
  func.func @transform_1(%arg0: i32, %arg1: i32) -> (i32, i32, i32) {
    %c1_i32 = arith.constant 1 : i32
    %0 = arith.muli %arg1, %c1_i32 : i32
    %c1_i32_0 = arith.constant 1 : i32
    %1 = arith.subi %0, %c1_i32_0 : i32
    %c0_i32 = arith.constant 0 : i32
    %2 = arith.maxsi %1, %c0_i32 : i32
    %c0_i32_1 = arith.constant 0 : i32
    %c0_i32_2 = arith.constant 0 : i32
    return %arg0, %2, %c0_i32_1 : i32, i32, i32
  }
  func.func @transform_2(%arg0: i32, %arg1: i32) -> (i32, i32, i32) {
    %c1_i32 = arith.constant 1 : i32
    %0 = arith.addi %arg1, %c1_i32 : i32
    %c1_i32_0 = arith.constant 1 : i32
    %1 = arith.muli %0, %c1_i32_0 : i32
    %c0_i32 = arith.constant 0 : i32
    %2 = arith.minsi %1, %c0_i32 : i32
    %c0_i32_1 = arith.constant 0 : i32
    %c0_i32_2 = arith.constant 0 : i32
    return %arg0, %2, %c0_i32_1 : i32, i32, i32
  }
  func.func @transform_3(%arg0: i32, %arg1: i32) -> (i32, i32, i32) {
    %c0_i32 = arith.constant 0 : i32
    %c0_i32_0 = arith.constant 0 : i32
    %c0_i32_1 = arith.constant 0 : i32
    %c0_i32_2 = arith.constant 0 : i32
    return %c0_i32, %c0_i32_0, %c0_i32_1 : i32, i32, i32
  }
  func.func @transform_4(%arg0: i32, %arg1: i32) -> (i32, i32, i32) {
    %c0_i32 = arith.constant 0 : i32
    %c0_i32_0 = arith.constant 0 : i32
    return %arg0, %arg1, %c0_i32 : i32, i32, i32
  }
}

</mosaic_0001>

<llo_original>
// kernel: tpu_custom_call.1
$region0: #{tpu_custom_call.1}
  #allocation0 [shape = 'u32[]', space=smem, size = 0x4, offset = 0x4, fixed_abs, tag = 'smem constant byte address 0x4 - core index']
  #allocation1 [shape = 'u32[144,128]{1,0:T(1,128)}', space=vmem, size = 0x12000, scoped, tag = 'internal scratch']
  #allocation2 [shape = 'bf16[10,32]{1,0:T(8,128)(2,1)}', space=vmem, size = 0x1000, scoped, tag = 'scratch operand']
  %s0 = inlined_call_operand.hbm [shape: f32[2,8,32], index: 0, kind: input, shape index: {}]
  %s1 = inlined_call_operand.hbm [shape: f32[2,8,32], index: 1, kind: input, shape index: {}]
  %s2 = inlined_call_operand.hbm [shape: f32[2,8,32], index: 2, kind: input, shape index: {}]
  %s3 = inlined_call_operand.hbm [shape: bf16[3,32,64], index: 3, kind: input, shape index: {}]
  %s4 = inlined_call_operand.hbm [shape: bf16[2,8,32], index: 4, kind: output, shape index: {}]
  %s5 = sld [smem:[#allocation0]]
  $region65: #{tpu_custom_call.1} parent=0
    _
  %s7 = ssub.s32 1, %s5
  %s8 = scalar_select 0, %s7, %s5
  $region1: #{tpu_custom_call.1} parent=0
    #allocation3 [shape = 'u8[8192]{0}', space=vmem, size = 0x2000, scoped, tag = 'input window, operand 0']
    #allocation4 [shape = 's32[2]{0}', space=sflag, size = 0x8, scoped, tag = 'scoped memory for tpu_custom_call.1']
    #allocation5 [shape = 's32[2]{0}', space=sflag, size = 0x8, scoped, tag = 'scoped memory for tpu_custom_call.1']
    #allocation6 [shape = 'u8[8192]{0}', space=vmem, size = 0x2000, scoped, tag = 'input window, operand 1']
    #allocation7 [shape = 's32[2]{0}', space=sflag, size = 0x8, scoped, tag = 'scoped memory for tpu_custom_call.1']
    #allocation8 [shape = 'u8[8192]{0}', space=vmem, size = 0x2000, scoped, tag = 'input window, operand 2']
    #allocation9 [shape = 'u8[24576]{0}', space=vmem, size = 0x6000, scoped, tag = 'input window, operand 3, single buffered']
    #allocation10 [shape = 's32[1]{0}', space=sflag, size = 0x4, scoped, tag = 'scoped memory for tpu_custom_call.1']
    #allocation11 [shape = 'u8[4096]{0}', space=vmem, size = 0x1000, scoped, tag = 'output window, operand 0']
    %9 = vsyncpa [#allocation4], 0
    %s10 = scalar_lea.sflag [#allocation4], 1
    %11 = vsyncpa %s10, 0
    %12 = vsyncpa [#allocation7], 0
    %s13 = scalar_lea.sflag [#allocation7], 1
    %14 = vsyncpa %s13, 0
    %15 = vsyncpa [#allocation10], 0
    %16 = vsyncpa [#allocation5], 0
    %s17 = scalar_lea.sflag [#allocation5], 1
    %18 = vsyncpa %s17, 0
    loop: start=0, step=1, limit=4
    $region2: #{tpu_custom_call.1} parent=1 // loop_pre_header
      _
    $region3: #{tpu_custom_call.1} parent=1 // loop_header
      %s20 = sphi 0, %s24
      %p21 = scmp.ge.s32.totalorder %s20, 4
      %s27 = sphi 0, %s39
      %s28 = sphi 0, %s35
      %s29 = sphi 0, %s27
      %s30 = sphi 0, %s28
      %s31 = sphi 0, %s29
      %s32 = sphi 0, %s30
      %s44 = sphi 0, %s46
      %s47 = sphi 0, %s44
      %s48 = sphi 0, %s47
      %s64 = sphi 0, %s48
      %s78 = sphi 0, %s80
      %s81 = sphi 0, %s78
      %s82 = sphi 0, %s81
      %s98 = sphi 0, %s82
      %s112 = sphi 0, %s114
      %s115 = sphi 0, %s112
      %s116 = sphi 0, %s115
      %s132 = sphi 0, %s116
      %s136 = sphi 0, %s136
      %s138 = sphi 0, %s136
      %s139 = sphi 0, %s138
      %s153 = sphi 0, %s139
      %s161 = sphi 0, %s163
      %s164 = sphi 0, %s161
      %s165 = sphi 0, %s164
      %s181 = sphi 0, %s165
    $region4: #{tpu_custom_call.1} parent=1 // loop_header_branch
      %23 = sbr.rel (%p21) target = $region8
    $region5: #{tpu_custom_call.1} parent=1 // loop_body
      %s25 = ssub.s32 %s20, 1
      %s26 = ssub.s32 %s20, 2
      %s33 = sadd.s32 1, %s28
      %p34 = scmp.ge.s32.totalorder %s33, 1
      %s35 = scalar_select %p34, 0, %s33
      %s36 = sadd.s32 1, %s27
      %s37 = scalar_select %p34, %s36, %s27
      %p38 = scmp.ge.s32.totalorder %s37, 2
      %s39 = scalar_select %p38, 0, %s37
      %s40 = ssub.s32 %s27, %s39
      %s41 = ssub.s32 %s28, %s35
      %s42 = sor.u32 %s40, %s41
      %p43 = scmp.eq.s32.totalorder %s42, 0
      %s45 = sadd.s32 %s44, 1
      %s46 = scalar_select %p43, %s44, %s45
      %p49 = pneg %p43
      %p50 = scmp.eq.s32.totalorder %s20, 1
      %p51 = por %p49, %p50
      %p52 = scmp.ne.s32.totalorder %s44, %s47
      %p53 = scmp.eq.s32.totalorder %s20, 0
      %p54 = por %p52, %p53
      %p55 = scmp.ne.s32.totalorder %s44, %s47
      %p56 = scmp.eq.s32.totalorder %s25, 1
      %p57 = por %p55, %p56
      %p58 = scmp.ne.s32.totalorder %s47, %s48
      %p59 = scmp.eq.s32.totalorder %s25, 0
      %p60 = por %p58, %p59
      %p61 = scmp.ne.s32.totalorder %s47, %s48
      %p62 = scmp.eq.s32.totalorder %s26, 1
      %p63 = por %p61, %p62
      %p65 = scmp.ne.s32.totalorder %s48, %s64
      %p66 = scmp.eq.s32.totalorder %s26, 0
      %p67 = por %p65, %p66
      %s68 = ssub.s32 %s28, 1
      %p69 = scmp.gt.s32.totalorder %s68, 0
      %s70 = scalar_select %p69, %s68, 0
      %s71 = ssub.s32 %s35, 1
      %p72 = scmp.gt.s32.totalorder %s71, 0
      %s73 = scalar_select %p72, %s71, 0
      %s74 = ssub.s32 %s27, %s39
      %s75 = ssub.s32 %s70, %s73
      %s76 = sor.u32 %s74, %s75
      %p77 = scmp.eq.s32.totalorder %s76, 0
      %s79 = sadd.s32 %s78, 1
      %s80 = scalar_select %p77, %s78, %s79
      %p83 = pneg %p77
      %p84 = scmp.eq.s32.totalorder %s20, 1
      %p85 = por %p83, %p84
      %p86 = scmp.ne.s32.totalorder %s78, %s81
      %p87 = scmp.eq.s32.totalorder %s20, 0
      %p88 = por %p86, %p87
      %p89 = scmp.ne.s32.totalorder %s78, %s81
      %p90 = scmp.eq.s32.totalorder %s25, 1
      %p91 = por %p89, %p90
      %p92 = scmp.ne.s32.totalorder %s81, %s82
      %p93 = scmp.eq.s32.totalorder %s25, 0
      %p94 = por %p92, %p93
      %p95 = scmp.ne.s32.totalorder %s81, %s82
      %p96 = scmp.eq.s32.totalorder %s26, 1
      %p97 = por %p95, %p96
      %p99 = scmp.ne.s32.totalorder %s82, %s98
      %p100 = scmp.eq.s32.totalorder %s26, 0
      %p101 = por %p99, %p100
      %s102 = sadd.s32 %s28, 1
      %p103 = scmp.lt.s32.totalorder %s102, 0
      %s104 = scalar_select %p103, %s102, 0
      %s105 = sadd.s32 %s35, 1
      %p106 = scmp.lt.s32.totalorder %s105, 0
      %s107 = scalar_select %p106, %s105, 0
      %s108 = ssub.s32 %s27, %s39
      %s109 = ssub.s32 %s104, %s107
      %s110 = sor.u32 %s108, %s109
      %p111 = scmp.eq.s32.totalorder %s110, 0
      %s113 = sadd.s32 %s112, 1
      %s114 = scalar_select %p111, %s112, %s113
      %p117 = pneg %p111
      %p118 = scmp.eq.s32.totalorder %s20, 1
      %p119 = por %p117, %p118
      %p120 = scmp.ne.s32.totalorder %s112, %s115
      %p121 = scmp.eq.s32.totalorder %s20, 0
      %p122 = por %p120, %p121
      %p123 = scmp.ne.s32.totalorder %s112, %s115
      %p124 = scmp.eq.s32.totalorder %s25, 1
      %p125 = por %p123, %p124
      %p126 = scmp.ne.s32.totalorder %s115, %s116
      %p127 = scmp.eq.s32.totalorder %s25, 0
      %p128 = por %p126, %p127
      %p129 = scmp.ne.s32.totalorder %s115, %s116
      %p130 = scmp.eq.s32.totalorder %s26, 1
      %p131 = por %p129, %p130
      %p133 = scmp.ne.s32.totalorder %s116, %s132
      %p134 = scmp.eq.s32.totalorder %s26, 0
      %p135 = por %p133, %p134
      %s137 = sadd.s32 %s136, 1
      %p140 = scmp.eq.s32.totalorder %s20, 1
      %p141 = scmp.ne.s32.totalorder %s136, %s138
      %p142 = scmp.eq.s32.totalorder %s20, 0
      %p143 = por %p141, %p142
      %p144 = scmp.ne.s32.totalorder %s136, %s138
      %p145 = scmp.eq.s32.totalorder %s25, 1
      %p146 = por %p144, %p145
      %p147 = scmp.ne.s32.totalorder %s138, %s139
      %p148 = scmp.eq.s32.totalorder %s25, 0
      %p149 = por %p147, %p148
      %p150 = scmp.ne.s32.totalorder %s138, %s139
      %p151 = scmp.eq.s32.totalorder %s26, 1
      %p152 = por %p150, %p151
      %p154 = scmp.ne.s32.totalorder %s139, %s153
      %p155 = scmp.eq.s32.totalorder %s26, 0
      %p156 = por %p154, %p155
      %s157 = ssub.s32 %s27, %s39
      %s158 = ssub.s32 %s28, %s35
      %s159 = sor.u32 %s157, %s158
      %p160 = scmp.eq.s32.totalorder %s159, 0
      %s162 = sadd.s32 %s161, 1
      %s163 = scalar_select %p160, %s161, %s162
      %p166 = pneg %p160
      %p167 = scmp.eq.s32.totalorder %s20, 1
      %p168 = por %p166, %p167
      %p169 = scmp.ne.s32.totalorder %s161, %s164
      %p170 = scmp.eq.s32.totalorder %s20, 0
      %p171 = por %p169, %p170
      %p172 = scmp.ne.s32.totalorder %s161, %s164
      %p173 = scmp.eq.s32.totalorder %s25, 1
      %p174 = por %p172, %p173
      %p175 = scmp.ne.s32.totalorder %s164, %s165
      %p176 = scmp.eq.s32.totalorder %s25, 0
      %p177 = por %p175, %p176
      %p178 = scmp.ne.s32.totalorder %s164, %s165
      %p179 = scmp.eq.s32.totalorder %s26, 1
      %p180 = por %p178, %p179
      %p182 = scmp.ne.s32.totalorder %s165, %s181
      %p183 = scmp.eq.s32.totalorder %s26, 0
      %p184 = por %p182, %p183
      %p185 = scmp.le.s32.totalorder 1, %s20
      %p186 = scmp.lt.s32.totalorder %s20, 3
      %p187 = pnand %p185, %p186
      %p188 = pneg %p187
      // Predicated region
      $region9: #{tpu_custom_call.1} parent=5 // pred_check
        _
      $region10: #{tpu_custom_call.1} parent=5 // pred_check_branch
        %190 = sbr.rel (%p187) target = $region12
      $region11: #{tpu_custom_call.1} parent=5 // pred_region
        %s191 = ssub.s32 %s20, 1
        // Predicated region
        $region13: #{tpu_custom_call.1} parent=11 // pred_check
          %p192 = pneg %p149
        $region14: #{tpu_custom_call.1} parent=11 // pred_check_branch
          %194 = sbr.rel (%p192) target = $region16
        $region15: #{tpu_custom_call.1} parent=11 // pred_region
          %s196 = ssub.s32 768, 768
          %197 = vsyncadd [#allocation10], %s196
          %s198 = sshll.u32 [#allocation9], 4
          %s199 = int_to_ptr.vmem [resolvable:$true] %s198
          %204 = dma.hbm_to_vmem [thread:$0]  %s3, 768, %s199, [#allocation10], 64, 64, 4
        $region16: #{tpu_custom_call.1} parent=11 // pred_fallthru
          _
      $region12: #{tpu_custom_call.1} parent=5 // pred_fallthru
        _
      %p205 = scmp.lt.s32.totalorder %s20, 2
      // Predicated region
      $region17: #{tpu_custom_call.1} parent=5 // pred_check
        %p206 = pneg %p205
      $region18: #{tpu_custom_call.1} parent=5 // pred_check_branch
        %208 = sbr.rel (%p206) target = $region20
      $region19: #{tpu_custom_call.1} parent=5 // pred_region
        // Predicated region
        $region21: #{tpu_custom_call.1} parent=19 // pred_check
          %p209 = pneg %p54
        $region22: #{tpu_custom_call.1} parent=19 // pred_check_branch
          %211 = sbr.rel (%p209) target = $region24
        $region23: #{tpu_custom_call.1} parent=19 // pred_region
          %s212 = sand.u32 %s44, 1
          %s213 = scalar_lea.sflag [#allocation4], %s212
          %s214 = sand.u32 %s44, 1
          %s215 = smul.addr %s214, 8
          %s216 = scalar_lea.vmem [#allocation3], %s215
          %s218 = ssub.s32 128, 128
          %219 = vsyncadd %s213, %s218
          %s220 = sadd.s32 %s28, %s27
          %s221 = smul.addr %s220, 128
          %s222 = scalar_lea.hbm %s0, %s221
          %s224 = sshll.u32 %s216, 4
          %s225 = int_to_ptr.vmem [resolvable:$true] %s224
          %227 = dma.hbm_to_vmem [thread:$0]  %s222, 128, %s225, %s213
        $region24: #{tpu_custom_call.1} parent=19 // pred_fallthru
          _
        // Predicated region
        $region25: #{tpu_custom_call.1} parent=19 // pred_check
          %p228 = pneg %p88
        $region26: #{tpu_custom_call.1} parent=19 // pred_check_branch
          %230 = sbr.rel (%p228) target = $region28
        $region27: #{tpu_custom_call.1} parent=19 // pred_region
          %s231 = sand.u32 %s20, 1
          %s232 = scalar_lea.sflag [#allocation7], %s231
          %s233 = sand.u32 %s78, 1
          %s234 = smul.addr %s233, 8
          %s235 = scalar_lea.vmem [#allocation6], %s234
          %s236 = ssub.s32 %s28, 1
          %p237 = scmp.gt.s32.totalorder %s236, 0
          %s238 = scalar_select %p237, %s236, 0
          %s240 = ssub.s32 128, 128
          %241 = vsyncadd %s232, %s240
          %s242 = sadd.s32 %s238, %s27
          %s243 = smul.addr %s242, 128
          %s244 = scalar_lea.hbm %s1, %s243
          %s246 = sshll.u32 %s235, 4
          %s247 = int_to_ptr.vmem [resolvable:$true] %s246
          %249 = dma.hbm_to_vmem [thread:$0]  %s244, 128, %s247, %s232
        $region28: #{tpu_custom_call.1} parent=19 // pred_fallthru
          _
        // Predicated region
        $region29: #{tpu_custom_call.1} parent=19 // pred_check
          %p250 = pneg %p122
        $region30: #{tpu_custom_call.1} parent=19 // pred_check_branch
          %252 = sbr.rel (%p250) target = $region32
        $region31: #{tpu_custom_call.1} parent=19 // pred_region
          %s253 = sand.u32 %s20, 1
          %s254 = scalar_lea.sflag [#allocation7], %s253
          %s255 = sand.u32 %s112, 1
          %s256 = smul.addr %s255, 8
          %s257 = scalar_lea.vmem [#allocation8], %s256
          %s258 = sadd.s32 %s28, 1
          %p259 = scmp.lt.s32.totalorder %s258, 0
          %s260 = scalar_select %p259, %s258, 0
          %s262 = ssub.s32 128, 128
          %263 = vsyncadd %s254, %s262
          %s264 = sadd.s32 %s260, %s27
          %s265 = smul.addr %s264, 128
          %s266 = scalar_lea.hbm %s2, %s265
          %s268 = sshll.u32 %s257, 4
          %s269 = int_to_ptr.vmem [resolvable:$true] %s268
          %271 = dma.hbm_to_vmem [thread:$0]  %s266, 128, %s269, %s254
        $region32: #{tpu_custom_call.1} parent=19 // pred_fallthru
          _
      $region20: #{tpu_custom_call.1} parent=5 // pred_fallthru
        _
      %p272 = scmp.le.s32.totalorder 1, %s20
      %p273 = scmp.lt.s32.totalorder %s20, 3
      %p274 = pnand %p272, %p273
      %p275 = pneg %p274
      // Predicated region
      $region33: #{tpu_custom_call.1} parent=5 // pred_check
        _
      $region34: #{tpu_custom_call.1} parent=5 // pred_check_branch
        %277 = sbr.rel (%p274) target = $region36
      $region35: #{tpu_custom_call.1} parent=5 // pred_region
        %s278 = ssub.s32 %s20, 1
        %s279 = sand.u32 %s47, 1
        %s280 = scalar_lea.sflag [#allocation4], %s279
        %s281 = sand.u32 %s47, 1
        %s282 = smul.addr %s281, 8
        %s283 = scalar_lea.vmem [#allocation3], %s282
        // Predicated region
        $region37: #{tpu_custom_call.1} parent=35 // pred_check
          %p284 = pneg %p60
        $region38: #{tpu_custom_call.1} parent=35 // pred_check_branch
          %286 = sbr.rel (%p284) target = $region40
        $region39: #{tpu_custom_call.1} parent=35 // pred_region
          %287 = dma.done %s280, 128
        $region40: #{tpu_custom_call.1} parent=35 // pred_fallthru
          _
        %s288 = sand.u32 %s25, 1
        %s289 = scalar_lea.sflag [#allocation7], %s288
        %s290 = sand.u32 %s81, 1
        %s291 = smul.addr %s290, 8
        %s292 = scalar_lea.vmem [#allocation6], %s291
        // Predicated region
        $region41: #{tpu_custom_call.1} parent=35 // pred_check
          %p293 = pneg %p94
        $region42: #{tpu_custom_call.1} parent=35 // pred_check_branch
          %295 = sbr.rel (%p293) target = $region44
        $region43: #{tpu_custom_call.1} parent=35 // pred_region
          %296 = dma.done %s289, 128
        $region44: #{tpu_custom_call.1} parent=35 // pred_fallthru
          _
        %s297 = sand.u32 %s25, 1
        %s298 = scalar_lea.sflag [#allocation7], %s297
        %s299 = sand.u32 %s115, 1
        %s300 = smul.addr %s299, 8
        %s301 = scalar_lea.vmem [#allocation8], %s300
        // Predicated region
        $region45: #{tpu_custom_call.1} parent=35 // pred_check
          %p302 = pneg %p128
        $region46: #{tpu_custom_call.1} parent=35 // pred_check_branch
          %304 = sbr.rel (%p302) target = $region48
        $region47: #{tpu_custom_call.1} parent=35 // pred_region
          %305 = dma.done %s298, 128
        $region48: #{tpu_custom_call.1} parent=35 // pred_fallthru
          _
        // Predicated region
        $region49: #{tpu_custom_call.1} parent=35 // pred_check
          %p306 = pneg %p149
        $region50: #{tpu_custom_call.1} parent=35 // pred_check_branch
          %308 = sbr.rel (%p306) target = $region52
        $region51: #{tpu_custom_call.1} parent=35 // pred_region
          %309 = dma.done [#allocation10], 768
        $region52: #{tpu_custom_call.1} parent=35 // pred_fallthru
          _
        %s310 = sand.u32 %s47, 1
        %s311 = scalar_lea.sflag [#allocation4], %s310
        %s312 = sand.u32 %s47, 1
        %s313 = smul.addr %s312, 8
        %s314 = scalar_lea.vmem [#allocation3], %s313
        %p315 = pneg %p60
        %p316 = pneg %p57
        %s317 = sand.u32 %s25, 1
        %s318 = scalar_lea.sflag [#allocation7], %s317
        %s319 = sand.u32 %s81, 1
        %s320 = smul.addr %s319, 8
        %s321 = scalar_lea.vmem [#allocation6], %s320
        %p322 = pneg %p94
        %p323 = pneg %p91
        %s324 = sand.u32 %s25, 1
        %s325 = scalar_lea.sflag [#allocation7], %s324
        %s326 = sand.u32 %s115, 1
        %s327 = smul.addr %s326, 8
        %s328 = scalar_lea.vmem [#allocation8], %s327
        %p329 = pneg %p128
        %p330 = pneg %p125
        %p331 = pneg %p149
        %p332 = pneg %p146
        %p333 = pneg %p177
        %p334 = pneg %p174
        %s335 = sand.u32 %s164, 1
        %s336 = scalar_lea.sflag [#allocation5], %s335
        %s337 = sand.u32 %s164, 1
        %s338 = smul.addr %s337, 4
        %s339 = scalar_lea.vmem [#allocation11], %s338
        %s340 = ssub.s32 %s30, 1
        %p341 = scmp.gt.s32.totalorder %s340, 0
        %s342 = scalar_select %p341, %s340, 0
        %s343 = sadd.s32 %s30, 1
        %p344 = scmp.lt.s32.totalorder %s343, 0
        %s345 = scalar_select %p344, %s343, 0
        %v347 = vld [vmem:[%s283] sm:$0xff]
        %v348 = vpack.c.bf16 %v347, %v347
        %v350 = vunpack.c.l.b16 %v348
        %v351 = vpack.c.b16 %v350, %v350
        %v353 = vshrl.u32 %v351, 16
        %v355 = vrot.slane %v353, 7
        %v356 = vshll.u32 %v351, 16
        %v358 = vor.u32 %v355, %v356
        %v359 = vrot.slane %v355, 4
        %vm362 = vcmask 257024
        %vm363 = vsmask.f32 7938
        %vm364 = vmand %vm362, %vm363
        %v365 = vld [vmem:[#allocation2] sm:$0xf]
        %v366 = vsel %vm364, %v358, %v365
        %367 = vst [vmem:[#allocation2] sm:$0xf] %v366
        %vm368 = vcmask 253952
        %vm369 = vsmask.f32 256
        %vm370 = vmand %vm368, %vm369
        %v371 = vld [vmem:[#allocation2 + $0x4] sm:$0x1]
        %v372 = vsel %vm370, %v359, %v371
        %373 = vst [vmem:[#allocation2 + $0x4] sm:$0x1] %v372
        %p374 = scmp.gt.s32.totalorder %s30, 0
        %v375 = vld [vmem:[%s292 + $0x7] sm:$0x1]
        %s376 = scalar_select %p374, 1, 0
        %v377 = vstv %s376
        %vm378 = vcmp.eq.s32.totalorder %v377, 1
        %v379 = vsel %vm378, %v375, 0.0
        %v380 = vpack.c.bf16 %v379, %v379
        %v381 = vld [vmem:[#allocation2] sm:$0x1]
        %v382 = vsel %vm370, %v380, %v381
        %383 = vst [vmem:[#allocation2] sm:$0x1] %v382
        %s384 = sadd.s32 %s30, 1
        %s385 = smul.u32 %s384, 8
        %v386 = vlaneseq
        %v387 = vshrl.u32 %v386, 7
        %v388 = vstv %s385
        %v389 = vadd.s32 %v388, %v387
        %vm390 = vcmp.lt.s32.totalorder %v389, 8
        %v391 = vld [vmem:[%s301] sm:$0x1]
        %v392 = vsel %vm390, 1, 0
        %vm393 = vcmp.eq.s32.totalorder %v392, 1
        %v394 = vsel %vm393, %v391, 0.0
        %v395 = vpack.c.bf16 %v394, %v394
        %v397 = vunpack.c.l.b16 %v395
        %v398 = vpack.c.b16 %v397, %v397
        %v400 = vshll.u32 %v398, 16
        %vm403 = vmand %vm368, %vm363
        %v404 = vld [vmem:[#allocation2 + $0x4] sm:$0x1]
        %v405 = vsel %vm403, %v400, %v404
        %406 = vst [vmem:[#allocation2 + $0x4] sm:$0x1] %v405
        %v407 = vld [vmem:[#allocation2] sm:$0xf]
        %v408 = vld [vmem:[#allocation9] sm:$0xf]
        %v409 = vld [vmem:[#allocation9 + $0x4] sm:$0xf]
        %v410 = vld [vmem:[#allocation9 + $0x8] sm:$0xf]
        %v411 = vld [vmem:[#allocation9 + $0xc] sm:$0xf]
        %v412 = vld [vmem:[#allocation2 + $0x4] sm:$0x1]
        %s413 = scalar_lea.vmem [#allocation9], 16
        %v414 = vld [vmem:[%s413] sm:$0xf]
        %v415 = vld [vmem:[%s413 + $0x4] sm:$0xf]
        %v416 = vld [vmem:[%s413 + $0x8] sm:$0xf]
        %v417 = vld [vmem:[%s413 + $0xc] sm:$0xf]
        %v420 = vunpack.c.l.b16 %v407
        %v421 = vunpack.c.l.b16 %v412
        %v422 = vpack.c.b16 %v421, %v420
        %v424 = vshrl.u32 %v422, 16
        %v426 = vshll.u32 %v422, 16
        %v428 = vrot.slane %v426, 1
        %v429 = vor.u32 %v424, %v428
        %v434 = vunpack.c.l.b16 %v414
        %v435 = vunpack.c.l.b16 %v415
        %v436 = vunpack.c.l.b16 %v416
        %v437 = vunpack.c.l.b16 %v417
        %v438 = vpack.c.b16 %v435, %v434
        %v439 = vpack.c.b16 %v437, %v436
        %vm442 = vcmask 261120
        %v444 = vsel %vm442, %v429, 0
        %446 = vmatprep.subr.bf16.mxu0 0
        %447 = vmatpush1.bf16.msra.mxu0 %v438
        %448 = vmatprep.subr.bf16.mxu0 0
        %449 = vmatpush1.bf16.msra.mxu0 %v439
        %450 = vmatprep.subr.bf16.mxu0 0
        %451 = vmatpush1.bf16.msra.mxu0 0
        %452 = vmatprep.subr.bf16.mxu0 0
        %453 = vmatpush1.bf16.msra.mxu0 0
        %454 = vmatprep.subr.bf16.mxu0 0
        %455 = vmatpush1.bf16.msra.mxu0 0
        %456 = vmatprep.subr.bf16.mxu0 0
        %457 = vmatpush1.bf16.msra.mxu0 0
        %458 = vmatprep.subr.bf16.mxu0 0
        %459 = vmatpush1.bf16.msra.mxu0 0
        %460 = vmatprep.subr.bf16.mxu0 0
        %461 = vmatpush1.bf16.msra.mxu0 0
        %462 = vmatprep.subr.bf16.mxu0 0
        %463 = vmatpush1.bf16.msra.mxu0 0
        %464 = vmatprep.subr.bf16.mxu0 0
        %465 = vmatpush1.bf16.msra.mxu0 0
        %466 = vmatprep.subr.bf16.mxu0 0
        %467 = vmatpush1.bf16.msra.mxu0 0
        %468 = vmatprep.subr.bf16.mxu0 0
        %469 = vmatpush1.bf16.msra.mxu0 0
        %470 = vmatprep.subr.bf16.mxu0 0
        %471 = vmatpush1.bf16.msra.mxu0 0
        %472 = vmatprep.subr.bf16.mxu0 0
        %473 = vmatpush1.bf16.msra.mxu0 0
        %474 = vmatprep.subr.bf16.mxu0 0
        %475 = vmatpush1.bf16.msra.mxu0 0
        %476 = vmatprep.subr.bf16.mxu0 0
        %477 = vmatpush1.bf16.msra.mxu0 0
        %478 = vmatprep.mubr.bf16.mxu0 0
        %479 = vmatmul.mubr.bf16.gmra.mrb[0].mxu0 %v444
        %v480 = vpop.f32.mrb[0].mxu0
        %v481 = vadd.f32 0.0, %v480
        %v482 = vpop.f32.mrb[0].mxu0
        %v483 = vpop.f32.mrb[0].mxu0
        %v484 = vpop.f32.mrb[0].mxu0
        %485 = vdwg.mxu0
        %v490 = vunpack.c.l.b16 %v408
        %v491 = vunpack.c.l.b16 %v409
        %v492 = vunpack.c.l.b16 %v410
        %v493 = vunpack.c.l.b16 %v411
        %v494 = vpack.c.b16 %v491, %v490
        %v495 = vpack.c.b16 %v493, %v492
        %v499 = vsel %vm442, %v407, 0
        %501 = vmatprep.subr.bf16.mxu0 0
        %502 = vmatpush1.bf16.msra.mxu0 %v494
        %503 = vmatprep.subr.bf16.mxu0 0
        %504 = vmatpush1.bf16.msra.mxu0 %v495
        %505 = vmatprep.subr.bf16.mxu0 0
        %506 = vmatpush1.bf16.msra.mxu0 0
        %507 = vmatprep.subr.bf16.mxu0 0
        %508 = vmatpush1.bf16.msra.mxu0 0
        %509 = vmatprep.subr.bf16.mxu0 0
        %510 = vmatpush1.bf16.msra.mxu0 0
        %511 = vmatprep.subr.bf16.mxu0 0
        %512 = vmatpush1.bf16.msra.mxu0 0
        %513 = vmatprep.subr.bf16.mxu0 0
        %514 = vmatpush1.bf16.msra.mxu0 0
        %515 = vmatprep.subr.bf16.mxu0 0
        %516 = vmatpush1.bf16.msra.mxu0 0
        %517 = vmatprep.subr.bf16.mxu0 0
        %518 = vmatpush1.bf16.msra.mxu0 0
        %519 = vmatprep.subr.bf16.mxu0 0
        %520 = vmatpush1.bf16.msra.mxu0 0
        %521 = vmatprep.subr.bf16.mxu0 0
        %522 = vmatpush1.bf16.msra.mxu0 0
        %523 = vmatprep.subr.bf16.mxu0 0
        %524 = vmatpush1.bf16.msra.mxu0 0
        %525 = vmatprep.subr.bf16.mxu0 0
        %526 = vmatpush1.bf16.msra.mxu0 0
        %527 = vmatprep.subr.bf16.mxu0 0
        %528 = vmatpush1.bf16.msra.mxu0 0
        %529 = vmatprep.subr.bf16.mxu0 0
        %530 = vmatpush1.bf16.msra.mxu0 0
        %531 = vmatprep.subr.bf16.mxu0 0
        %532 = vmatpush1.bf16.msra.mxu0 0
        %533 = vmatprep.mubr.bf16.mxu0 0
        %534 = vmatmul.mubr.bf16.gmra.mrb[0].mxu0 %v499
        %v535 = vpop.f32.mrb[0].mxu0
        %v536 = vadd.f32 %v481, %v535
        %v537 = vpop.f32.mrb[0].mxu0
        %v538 = vpop.f32.mrb[0].mxu0
        %v539 = vpop.f32.mrb[0].mxu0
        %540 = vdwg.mxu0
        %v541 = vld [vmem:[#allocation2] sm:$0xe]
        %s542 = scalar_lea.vmem [#allocation9], 32
        %v543 = vld [vmem:[%s542] sm:$0xf]
        %v544 = vld [vmem:[%s542 + $0x4] sm:$0xf]
        %v545 = vld [vmem:[%s542 + $0x8] sm:$0xf]
        %v546 = vld [vmem:[%s542 + $0xc] sm:$0xf]
        %v548 = vunpack.c.l.b16 %v541
        %v549 = vpack.c.b16 %v421, %v548
        %v550 = vrot.slane %v549, 1
        %v555 = vunpack.c.l.b16 %v543
        %v556 = vunpack.c.l.b16 %v544
        %v557 = vunpack.c.l.b16 %v545
        %v558 = vunpack.c.l.b16 %v546
        %v559 = vpack.c.b16 %v556, %v555
        %v560 = vpack.c.b16 %v558, %v557
        %v564 = vsel %vm442, %v550, 0
        %566 = vmatprep.subr.bf16.mxu0 0
        %567 = vmatpush1.bf16.msra.mxu0 %v559
        %568 = vmatprep.subr.bf16.mxu0 0
        %569 = vmatpush1.bf16.msra.mxu0 %v560
        %570 = vmatprep.subr.bf16.mxu0 0
        %571 = vmatpush1.bf16.msra.mxu0 0
        %572 = vmatprep.subr.bf16.mxu0 0
        %573 = vmatpush1.bf16.msra.mxu0 0
        %574 = vmatprep.subr.bf16.mxu0 0
        %575 = vmatpush1.bf16.msra.mxu0 0
        %576 = vmatprep.subr.bf16.mxu0 0
        %577 = vmatpush1.bf16.msra.mxu0 0
        %578 = vmatprep.subr.bf16.mxu0 0
        %579 = vmatpush1.bf16.msra.mxu0 0
        %580 = vmatprep.subr.bf16.mxu0 0
        %581 = vmatpush1.bf16.msra.mxu0 0
        %582 = vmatprep.subr.bf16.mxu0 0
        %583 = vmatpush1.bf16.msra.mxu0 0
        %584 = vmatprep.subr.bf16.mxu0 0
        %585 = vmatpush1.bf16.msra.mxu0 0
        %586 = vmatprep.subr.bf16.mxu0 0
        %587 = vmatpush1.bf16.msra.mxu0 0
        %588 = vmatprep.subr.bf16.mxu0 0
        %589 = vmatpush1.bf16.msra.mxu0 0
        %590 = vmatprep.subr.bf16.mxu0 0
        %591 = vmatpush1.bf16.msra.mxu0 0
        %592 = vmatprep.subr.bf16.mxu0 0
        %593 = vmatpush1.bf16.msra.mxu0 0
        %594 = vmatprep.subr.bf16.mxu0 0
        %595 = vmatpush1.bf16.msra.mxu0 0
        %596 = vmatprep.subr.bf16.mxu0 0
        %597 = vmatpush1.bf16.msra.mxu0 0
        %598 = vmatprep.mubr.bf16.mxu0 0
        %599 = vmatmul.mubr.bf16.gmra.mrb[0].mxu0 %v564
        %v600 = vpop.f32.mrb[0].mxu0
        %v601 = vadd.f32 0.0, %v600
        %v602 = vpop.f32.mrb[0].mxu0
        %v603 = vpop.f32.mrb[0].mxu0
        %v604 = vpop.f32.mrb[0].mxu0
        %605 = vdwg.mxu0
        %v606 = vadd.f32 %v536, %v601
        %v607 = vxor.u32 %v606, 2147483648
        %v608 = vmul.f32 %v607, 1.442695
        %v609 = vpow.pop %v608
        %v610 = vadd.f32 %v609, 1.0
        %v611 = vrcp.pop %v610
        %v612 = vmul.f32 1.0, %v611
        %614 = vrot.lane.b32.xlu0 %v612, 96
        %v615 = vpop.permute.xlu0 %614
        %v617 = vmul.f32 %v606, %v615
        %v618 = vpack.c.bf16 %v617, %v617
        %vm619 = vcmask 257024
        %620 = vst.msk [vmem:[%s339] sm:$0xf] %vm619, %v618
        %s621 = sand.u32 %s164, 1
        %s622 = scalar_lea.sflag [#allocation5], %s621
        %s623 = sand.u32 %s164, 1
        %s624 = smul.addr %s623, 4
        %s625 = scalar_lea.vmem [#allocation11], %s624
        // Predicated region
        $region53: #{tpu_custom_call.1} parent=35 // pred_check
          %p626 = pneg %p174
        $region54: #{tpu_custom_call.1} parent=35 // pred_check_branch
          %628 = sbr.rel (%p626) target = $region56
        $region55: #{tpu_custom_call.1} parent=35 // pred_region
          %s630 = ssub.s32 64, 64
          %631 = vsyncadd %s622, %s630
          %s632 = sadd.s32 %s30, %s29
          %s633 = smul.addr %s632, 64
          %s634 = scalar_lea.hbm %s4, %s633
          %s636 = sshll.u32 %s625, 4
          %s637 = int_to_ptr.vmem [resolvable:$true] %s636
          %639 = dma.vmem_to_hbm [thread:$0]  %s637, 64, %s634, %s622
        $region56: #{tpu_custom_call.1} parent=35 // pred_fallthru
          _
      $region36: #{tpu_custom_call.1} parent=5 // pred_fallthru
        _
      %p640 = scmp.le.s32.totalorder 2, %s20
      // Predicated region
      $region57: #{tpu_custom_call.1} parent=5 // pred_check
        %p641 = pneg %p640
      $region58: #{tpu_custom_call.1} parent=5 // pred_check_branch
        %643 = sbr.rel (%p641) target = $region60
      $region59: #{tpu_custom_call.1} parent=5 // pred_region
        %s644 = ssub.s32 %s20, 2
        // Predicated region
        $region61: #{tpu_custom_call.1} parent=59 // pred_check
          %p645 = pneg %p180
        $region62: #{tpu_custom_call.1} parent=59 // pred_check_branch
          %647 = sbr.rel (%p645) target = $region64
        $region63: #{tpu_custom_call.1} parent=59 // pred_region
          %s648 = sand.u32 %s165, 1
          %s649 = scalar_lea.sflag [#allocation5], %s648
          %s650 = sand.u32 %s165, 1
          %s651 = smul.addr %s650, 4
          %s652 = scalar_lea.vmem [#allocation11], %s651
          %653 = dma.done %s649, 64
        $region64: #{tpu_custom_call.1} parent=59 // pred_fallthru
          _
      $region60: #{tpu_custom_call.1} parent=5 // pred_fallthru
        _
    $region6: #{tpu_custom_call.1} parent=1 // loop_footer
      %s24 = sadd.s32 1, %s20
    $region7: #{tpu_custom_call.1} parent=1 // loop_footer_branch
      %19 = sbr.rel target = $region3
    $region8: #{tpu_custom_call.1} parent=1 // loop_exit
      _
    %654 = vsyncpa [#allocation4], 1
    %s655 = scalar_lea.sflag [#allocation4], 1
    %656 = vsyncpa %s655, 1
    %657 = vsyncpa [#allocation7], 1
    %s658 = scalar_lea.sflag [#allocation7], 1
    %659 = vsyncpa %s658, 1
    %660 = vsyncpa [#allocation10], 1
    %661 = vsyncpa [#allocation5], 1
    %s662 = scalar_lea.sflag [#allocation5], 1
    %663 = vsyncpa %s662, 1

</llo_original>
